<compile_context>
chip_gen: v7x
topology: tpu7x:2x2x1
jax: 0.10.0
libtpu: 0.0.40
codegen_flags: <defaults>
</compile_context>

<pallas_src>
import jax
import jax.numpy as jnp
from jax.experimental import pallas as pl
from jax.experimental.pallas import tpu as pltpu


# ----------------------------- kernel -----------------------------------------

def _add_bias_kernel(x_ref, b_ref, o_ref):
    # b_ref broadcasts against x_ref:
    #   (TILE_R, 1) per-row bias  (4D / NCHW path, flattened to rows x HW)
    #   (1, TILE_L) per-col bias  (2D path, bias over the channel axis)
    o_ref[...] = (x_ref[...] + b_ref[...]).astype(o_ref.dtype)


# ----------------------------- tiling helpers ----------------------------------

_LANE = 128
_SUBLANE = 8
_TARGET_BLOCK_BYTES = 2 * 1024 * 1024  # per-block budget; ~4x live w/ double buffering


def _lane_tile(n_lanes):
    """Block size for the last (lane) dim: a multiple of 128, or the full extent."""
    if n_lanes % _LANE == 0:
        return min(n_lanes, 2048)
    if n_lanes < _LANE:
        return n_lanes                      # full extent (always legal)
    return min((n_lanes // _LANE) * _LANE, 2048)


def _row_tile(n_rows, lane_tile, itemsize):
    """Block size for the second-to-last dim: a multiple of 8, or the full extent."""
    if n_rows <= _SUBLANE:
        return n_rows                       # full extent
    budget = max(_SUBLANE, _TARGET_BLOCK_BYTES // max(1, lane_tile * itemsize))
    t = min(n_rows, budget, 1024)
    return max(_SUBLANE, (t // _SUBLANE) * _SUBLANE)


def _tiled_add(x2d, b2d, out_dtype):
    """x2d: (R, L); b2d: (R, 1) row-bias or (1, L) col-bias; returns x2d + b2d."""
    R, L = x2d.shape
    itemsize = jnp.dtype(out_dtype).itemsize
    tl = _lane_tile(L)
    tr = _row_tile(R, tl, itemsize)
    grid = (pl.cdiv(R, tr), pl.cdiv(L, tl))

    if b2d.shape[0] == 1:
        # Column bias (1, L): follow the lane tiling of x.
        b_spec = pl.BlockSpec((1, tl), lambda i, j: (0, j))
    else:
        # Row bias (R, 1): follow the row tiling of x.
        b_spec = pl.BlockSpec((tr, 1), lambda i, j: (i, 0))

    return pl.pallas_call(
        _add_bias_kernel,
        out_shape=jax.ShapeDtypeStruct((R, L), out_dtype),
        grid=grid,
        in_specs=[
            pl.BlockSpec((tr, tl), lambda i, j: (i, j)),
            b_spec,
        ],
        out_specs=pl.BlockSpec((tr, tl), lambda i, j: (i, j)),
        compiler_params=pltpu.CompilerParams(
            dimension_semantics=("parallel", "parallel")),
    )(x2d, b2d)


# ----------------------------- wrapper ------------------------------------------

def add_bias(x, bias):
    """Pallas equivalent of AddBias.forward.

    bias: (C,) or (C, 1) array (the parameter is stored as (C, 1) like PyTorch).
    """
    bias_flat = jnp.asarray(bias).reshape(-1)
    C = bias_flat.shape[0]
    out_dtype = jnp.promote_types(x.dtype, bias_flat.dtype)  # PyTorch promotion
    b = bias_flat.astype(out_dtype)

    if x.ndim == 2:
        N, Cx = x.shape
        assert Cx == C
        return _tiled_add(x, b.reshape(1, C), out_dtype)

    elif x.ndim == 4:
        N, Cx, H, W = x.shape
        assert Cx == C
        R, HW = N * C, H * W
        # Free, contiguous reshape: spatial extent becomes the lane axis.
        x2d = x.reshape(R, HW)
        # Tiny per-row bias column: row r of x2d belongs to channel r % C.
        b_rows = jnp.broadcast_to(b[None, :], (N, C)).reshape(R, 1)
        y2d = _tiled_add(x2d, b_rows, out_dtype)
        return y2d.reshape(N, C, H, W)

    else:
        raise ValueError("AddBias expects a 2D or 4D input")


# ----------------------------- demo / check -------------------------------------

if __name__ == "__main__":
    key = jax.random.PRNGKey(0)
    k_bias, k_x4, k_x2, k_x4b = jax.random.split(key, 4)

    C = 4
    # The module stores bias.unsqueeze(1) -> (C, 1).
    bias_param = jax.random.normal(k_bias, (C, 1), dtype=jnp.float32)
    bias_vec = bias_param[:, 0]  # (C,)

    # 4D NCHW input.
    x4 = jax.random.normal(k_x4, (2, C, 16, 16), dtype=jnp.float32)
    # 2D input (e.g. action logits).
    x2 = jax.random.normal(k_x2, (2, C), dtype=jnp.float32)

    y4 = jax.block_until_ready(add_bias(x4, bias_vec))
    y2 = jax.block_until_ready(add_bias(x2, bias_vec))

    ref4 = x4 + bias_vec.reshape(1, C, 1, 1)
    ref2 = x2 + bias_vec.reshape(1, C)

    assert y4.shape == x4.shape and y4.dtype == x4.dtype
    assert y2.shape == x2.shape and y2.dtype == x2.dtype
    assert jnp.allclose(y4, ref4, atol=1e-6)
    assert jnp.allclose(y2, ref2, atol=1e-6)

    # Partial-row-tile case (R = 12 not a multiple of 8 -> two row blocks).
    x4b = jax.random.normal(k_x4b, (3, C, 16, 16), dtype=jnp.float32)
    y4b = jax.block_until_ready(add_bias(x4b, bias_vec))
    assert jnp.allclose(y4b, x4b + bias_vec.reshape(1, C, 1, 1), atol=1e-6)

    # Type promotion (bf16 x + f32 bias -> f32 output, like PyTorch).
    y2_bf16 = jax.block_until_ready(add_bias(x2.astype(jnp.bfloat16), bias_vec))
    assert y2_bf16.dtype == jnp.float32
    assert jnp.allclose(y2_bf16,
                        x2.astype(jnp.bfloat16).astype(jnp.float32)
                        + bias_vec.reshape(1, C), atol=1e-5)

    print("KERNEL_OK")
</pallas_src>

<mosaic_0001>
module attributes {stable_mosaic.version = 11 : i64} {
  func.func @_add_bias_kernel(%arg0: i32, %arg1: i32, %arg2: memref<8x256xf32, #tpu.memory_space<vmem>>, %arg3: memref<8x1xf32, #tpu.memory_space<vmem>>, %arg4: memref<8x256xf32, #tpu.memory_space<vmem>>) attributes {dimension_semantics = [#tpu.dimension_semantics<parallel>, #tpu.dimension_semantics<parallel>], iteration_bounds = array<i64: 1, 1>, scalar_prefetch = 0 : i64, scratch_operands = 0 : i64, tpu.core_type = #tpu.core_type<tc>, window_params = [{transform_indices = @transform_0, window_bounds = array<i64: 8, 256>}, {transform_indices = @transform_1, window_bounds = array<i64: 8, 1>}, {transform_indices = @transform_2, window_bounds = array<i64: 8, 256>}]} {
    %c0 = arith.constant 0 : index
    %c0_0 = arith.constant 0 : index
    %0 = vector.load %arg2[%c0, %c0_0] : memref<8x256xf32, #tpu.memory_space<vmem>>, vector<8x256xf32>
    %c0_1 = arith.constant 0 : index
    %c0_2 = arith.constant 0 : index
    %1 = vector.load %arg3[%c0_1, %c0_2] : memref<8x1xf32, #tpu.memory_space<vmem>>, vector<8x1xf32>
    %2 = vector.broadcast %1 : vector<8x1xf32> to vector<8x256xf32>
    %3 = arith.addf %0, %2 : vector<8x256xf32>
    %c0_3 = arith.constant 0 : index
    %c0_4 = arith.constant 0 : index
    %4 = vector.load %arg4[%c0_3, %c0_4] : memref<8x256xf32, #tpu.memory_space<vmem>>, vector<8x256xf32>
    tpu.vector_store %arg4[%c0_3, %c0_4], %3 {strides = array<i32>} : memref<8x256xf32, #tpu.memory_space<vmem>>, vector<8x256xf32>,
    return
  }
  func.func @transform_0(%arg0: i32, %arg1: i32) -> (i32, i32) {
    %c0_i32 = arith.constant 0 : i32
    return %arg0, %arg1 : i32, i32
  }
  func.func @transform_1(%arg0: i32, %arg1: i32) -> (i32, i32) {
    %c0_i32 = arith.constant 0 : i32
    %c0_i32_0 = arith.constant 0 : i32
    return %arg0, %c0_i32 : i32, i32
  }
  func.func @transform_2(%arg0: i32, %arg1: i32) -> (i32, i32) {
    %c0_i32 = arith.constant 0 : i32
    return %arg0, %arg1 : i32, i32
  }
}

</mosaic_0001>

<llo_original>
// kernel: tpu_custom_call.1
$region0: #{tpu_custom_call.1}
  #allocation0 [shape = 'u32[]', space=smem, size = 0x4, offset = 0x4, fixed_abs, tag = 'smem constant byte address 0x4 - core index']
  #allocation1 [shape = 'u32[144,128]{1,0:T(1,128)}', space=vmem, size = 0x12000, scoped, tag = 'internal scratch']
  %s0 = inlined_call_operand.hbm [shape: f32[8,256], index: 0, kind: input, shape index: {}]
  %s1 = inlined_call_operand.vmem [shape: f32[8,1], index: 1, kind: input, shape index: {}]
  %s2 = inlined_call_operand.hbm [shape: f32[8,256], index: 2, kind: output, shape index: {}]
  %s3 = sld [smem:[#allocation0]]
  $region22: #{tpu_custom_call.1} parent=0
    _
  %s5 = ssub.s32 1, %s3
  %s6 = scalar_select 0, %s5, %s3
  $region1: #{tpu_custom_call.1} parent=0
    #allocation2 [shape = 'u8[8192]{0}', space=vmem, size = 0x2000, scoped, tag = 'input window, operand 0, single buffered']
    #allocation3 [shape = 's32[1]{0}', space=sflag, size = 0x4, scoped, tag = 'scoped memory for tpu_custom_call.1']
    #allocation4 [shape = 's32[1]{0}', space=sflag, size = 0x4, scoped, tag = 'scoped memory for tpu_custom_call.1']
    #allocation5 [shape = 'u8[8192]{0}', space=vmem, size = 0x2000, scoped, tag = 'output window, operand 0, single buffered']
    %7 = vsyncpa [#allocation3], 0
    %8 = vsyncpa [#allocation4], 0
    // Predicated region
    $region2: #{tpu_custom_call.1} parent=1 // pred_check
      _
    $region3: #{tpu_custom_call.1} parent=1 // pred_check_branch
      %10 = sbr.rel (0) target = $region5
    $region4: #{tpu_custom_call.1} parent=1 // pred_region
      %s12 = ssub.s32 256, 256
      %13 = vsyncadd [#allocation3], %s12
      %s15 = sshll.u32 [#allocation2], 4
      %s16 = int_to_ptr.vmem [resolvable:$true] %s15
      %18 = dma.hbm_to_vmem [thread:$0]  %s0, 256, %s16, [#allocation3]
    $region5: #{tpu_custom_call.1} parent=1 // pred_fallthru
      _
    // Predicated region
    $region6: #{tpu_custom_call.1} parent=1 // pred_check
      _
    $region7: #{tpu_custom_call.1} parent=1 // pred_check_branch
      %20 = sbr.rel (0) target = $region9
    $region8: #{tpu_custom_call.1} parent=1 // pred_region
      _
    $region9: #{tpu_custom_call.1} parent=1 // pred_fallthru
      _
    // Predicated region
    $region10: #{tpu_custom_call.1} parent=1 // pred_check
      _
    $region11: #{tpu_custom_call.1} parent=1 // pred_check_branch
      %22 = sbr.rel (0) target = $region13
    $region12: #{tpu_custom_call.1} parent=1 // pred_region
      %23 = dma.done [#allocation3], 256
    $region13: #{tpu_custom_call.1} parent=1 // pred_fallthru
      _
    %v24 = vld [vmem:[#allocation2] sm:$0xff]
    %v25 = vld [vmem:[#allocation2 + $0x8] sm:$0xff]
    %v26 = vld [vmem:[%s1] sm:$0xff]
    %28 = vset.pattern.permute.xlu0 0
    %29 = vperm.xlu0 %28, %v26
    %v30 = vpop.permute.xlu0 %29
    %v32 = vadd.f32 %v24, %v30
    %v33 = vadd.f32 %v25, %v30
    %34 = vst [vmem:[#allocation5] sm:$0xff] %v32
    %35 = vst [vmem:[#allocation5 + $0x8] sm:$0xff] %v33
    // Predicated region
    $region14: #{tpu_custom_call.1} parent=1 // pred_check
      _
    $region15: #{tpu_custom_call.1} parent=1 // pred_check_branch
      %37 = sbr.rel (0) target = $region17
    $region16: #{tpu_custom_call.1} parent=1 // pred_region
      %s39 = ssub.s32 256, 256
      %40 = vsyncadd [#allocation4], %s39
      %s42 = sshll.u32 [#allocation5], 4
      %s43 = int_to_ptr.vmem [resolvable:$true] %s42
      %45 = dma.vmem_to_hbm [thread:$0]  %s43, 256, %s2, [#allocation4]
    $region17: #{tpu_custom_call.1} parent=1 // pred_fallthru
      _
    // Predicated region
    $region18: #{tpu_custom_call.1} parent=1 // pred_check
      _
    $region19: #{tpu_custom_call.1} parent=1 // pred_check_branch
      %47 = sbr.rel (0) target = $region21
    $region20: #{tpu_custom_call.1} parent=1 // pred_region
      %48 = dma.done [#allocation4], 256
    $region21: #{tpu_custom_call.1} parent=1 // pred_fallthru
      _
    %49 = vsyncpa [#allocation3], 1
    %50 = vsyncpa [#allocation4], 1

</llo_original>
